<compile_context>
chip_gen: v5e
topology: v5e:2x2
jax: 0.10.0
libtpu: 0.0.40
codegen_flags: <defaults>
</compile_context>

<pallas_src>
import functools

import jax
import jax.numpy as jnp
import numpy as np
from jax.experimental import pallas as pl
from jax.experimental.pallas import tpu as pltpu

NUM_OPS3 = 3  # ['none', 'skip_connect', 'linear_relu']
NUM_OPS4 = 3  # ['sum', 'max', 'mean']


def _round_up(x, m):
    return (x + m - 1) // m * m


def _cell_fuse_kernel(steps, w1_ref, w2_ref,
                      x1_ref, x2_ref, x3_ref, x4_ref,
                      W_ref, b_ref, out_ref):
    """Whole Cell_fuse forward for one (tm, D) row tile.

    grid = (Mp // tm,).  All DARTS steps / edges are statically unrolled
    (edge count is small), so every grid step runs all edge matmuls
    back-to-back on VMEM-resident weights.

    Edge e (MixedOp, pri=3):
        t_e = w1[e,1] * h + w1[e,2] * relu(h @ W_e + b_e)
    ('none' weight w1[e,0] multiplies the zero op and is dropped.)
    Fusion (MixedOp_fuse), with sum+mean pre-folded on the host:
        s = w2_eff[i,0] * sum_e t_e + w2_eff[i,1] * max_e t_e
    """
    states = [x1_ref[...], x2_ref[...], x3_ref[...], x4_ref[...]]  # (tm, D) each
    off = 0
    for i in range(steps):
        acc_sum = None
        acc_max = None
        for j, h in enumerate(states):
            e = off + j
            lin = jnp.dot(h, W_ref[e], preferred_element_type=jnp.float32) + b_ref[e]
            t = w1_ref[e, 1] * h + w1_ref[e, 2] * jnp.maximum(lin, 0.0)
            if j == 0:
                acc_sum = t
                acc_max = t
            else:
                acc_sum = acc_sum + t
                acc_max = jnp.maximum(acc_max, t)
        off += len(states)
        fused = w2_ref[i, 0] * acc_sum + w2_ref[i, 1] * acc_max
        out_ref[i] = fused
        states.append(fused)


def cell_fuse_forward(W_stack, b_stack, x1, x2, x3, x4, weights1, weights2,
                      steps, *, tm=256):
    """Mirrors Cell_fuse.forward: returns [x1, x2, x3, x4, s_0, ..., s_{steps-1}].

    W_stack: (E, D, D), b_stack: (E, 1, D) with E = sum(4 + i for i in range(steps)).
    weights1: (E, NUM_OPS3) softmaxed alphas, weights2: (steps, NUM_OPS4).
    """
    B, L, D = x1.shape
    M = B * L
    E = sum(4 + i for i in range(steps))
    assert W_stack.shape == (E, D, D)
    assert b_stack.shape == (E, 1, D)
    assert weights1.shape[0] == E and weights2.shape[0] == steps

    # Lane-dense layout: pad d_model to a multiple of 128 (unmasked stores)
    # and rows to a multiple of the row tile (tail rows computed, discarded).
    Dp = _round_up(D, 128)
    tm = _round_up(min(tm, _round_up(M, 8)), 8)
    Mp = _round_up(M, tm)

    def prep_x(x):
        x = x.reshape(M, D).astype(jnp.float32)
        return jnp.pad(x, ((0, Mp - M), (0, Dp - D)))

    xs = [prep_x(x) for x in (x1, x2, x3, x4)]
    Wp = jnp.pad(W_stack.astype(jnp.float32), ((0, 0), (0, Dp - D), (0, Dp - D)))
    bp = jnp.pad(b_stack.astype(jnp.float32), ((0, 0), (0, 0), (0, Dp - D)))

    # Fold sum + mean fusion weights: mean = sum / n_states(step).
    n_per_step = jnp.asarray([4.0 + i for i in range(steps)], jnp.float32)
    w2_eff = jnp.stack(
        [weights2[:, 0].astype(jnp.float32) + weights2[:, 2].astype(jnp.float32) / n_per_step,
         weights2[:, 1].astype(jnp.float32)], axis=-1)
    w1 = weights1.astype(jnp.float32)

    kernel = functools.partial(_cell_fuse_kernel, steps)
    out = pl.pallas_call(
        kernel,
        out_shape=jax.ShapeDtypeStruct((steps, Mp, Dp), jnp.float32),
        grid=(Mp // tm,),
        in_specs=[
            pl.BlockSpec(memory_space=pltpu.MemorySpace.SMEM),     # w1     (E, 3)
            pl.BlockSpec(memory_space=pltpu.MemorySpace.SMEM),     # w2_eff (steps, 2)
            pl.BlockSpec((tm, Dp), lambda m: (m, 0)),              # x1 rows
            pl.BlockSpec((tm, Dp), lambda m: (m, 0)),              # x2 rows
            pl.BlockSpec((tm, Dp), lambda m: (m, 0)),              # x3 rows
            pl.BlockSpec((tm, Dp), lambda m: (m, 0)),              # x4 rows
            pl.BlockSpec((E, Dp, Dp), lambda m: (0, 0, 0)),        # W  (VMEM-resident)
            pl.BlockSpec((E, 1, Dp), lambda m: (0, 0, 0)),         # b  (VMEM-resident)
        ],
        out_specs=pl.BlockSpec((steps, tm, Dp), lambda m: (0, m, 0)),
        compiler_params=pltpu.CompilerParams(
            dimension_semantics=("parallel",)),
    )(w1, w2_eff, *xs, Wp, bp)

    new_states = [out[i, :M, :D].reshape(B, L, D) for i in range(steps)]
    return [x1, x2, x3, x4] + new_states


def cell_fuse_reference(W_stack, b_stack, x1, x2, x3, x4, weights1, weights2, steps):
    """Pure-JAX reference mirroring Cell_fuse.forward for correctness checks."""
    states = [x1, x2, x3, x4]
    offset = 0
    for i in range(steps):
        ts = []
        for j, h in enumerate(states):
            e = offset + j
            W = W_stack[e]
            b = b_stack[e, 0]
            w = weights1[e]
            ts.append(w[1] * h + w[2] * jax.nn.relu(h @ W + b))
        offset += len(states)
        v = weights2[i]
        stk = jnp.stack(ts, axis=0)
        s = v[0] * stk.sum(0) + v[1] * stk.max(0) + v[2] * stk.mean(0)
        states.append(s)
    return states


def _run_case(key, B, L, D, steps):
    k = jax.random.split(key, 8)
    x1 = jax.random.normal(k[0], (B, L, D), jnp.float32)
    x2 = jax.random.normal(k[1], (B, L, D), jnp.float32)
    x3 = jax.random.normal(k[2], (B, L, D), jnp.float32)
    x4 = jax.random.normal(k[3], (B, L, D), jnp.float32)

    E = sum(4 + i for i in range(steps))
    weights1 = jax.nn.softmax(
        jax.random.normal(k[4], (E, NUM_OPS3), jnp.float32), axis=-1)
    weights2 = jax.nn.softmax(
        jax.random.normal(k[5], (steps, NUM_OPS4), jnp.float32), axis=-1)

    # Per-edge linear parameters (the 'linear_relu' primitive).
    W_stack = 0.1 * jax.random.normal(k[6], (E, D, D), jnp.float32)
    b_stack = 0.1 * jax.random.normal(k[7], (E, 1, D), jnp.float32)

    out_states = cell_fuse_forward(W_stack, b_stack, x1, x2, x3, x4,
                                   weights1, weights2, steps)
    out_states = jax.block_until_ready(out_states)

    ref_states = cell_fuse_reference(W_stack, b_stack, x1, x2, x3, x4,
                                     weights1, weights2, steps)
    for o, r in zip(out_states, ref_states):
        np.testing.assert_allclose(np.asarray(o), np.asarray(r),
                                   rtol=1e-3, atol=1e-3)


if __name__ == "__main__":
    root = jax.random.PRNGKey(0)
    # Lane-dense shape (d_model multiple of 128) — the intended fast path.
    _run_case(jax.random.fold_in(root, 0), B=2, L=8, D=128, steps=2)
    # Robustness: d_model < 128 and rows not a multiple of 8 exercise padding.
    _run_case(jax.random.fold_in(root, 1), B=3, L=5, D=32, steps=2)
    print("KERNEL_OK")
</pallas_src>

<mosaic_0001>
module attributes {stable_mosaic.version = 11 : i64} {
  func.func @_cell_fuse_kernel(%arg0: i32, %arg1: memref<9x3xf32, #tpu.memory_space<smem>>, %arg2: memref<2x2xf32, #tpu.memory_space<smem>>, %arg3: memref<16x128xf32, #tpu.memory_space<vmem>>, %arg4: memref<16x128xf32, #tpu.memory_space<vmem>>, %arg5: memref<16x128xf32, #tpu.memory_space<vmem>>, %arg6: memref<16x128xf32, #tpu.memory_space<vmem>>, %arg7: memref<9x128x128xf32, #tpu.memory_space<vmem>>, %arg8: memref<9x1x128xf32, #tpu.memory_space<vmem>>, %arg9: memref<2x16x128xf32, #tpu.memory_space<vmem>>) attributes {dimension_semantics = [#tpu.dimension_semantics<parallel>], iteration_bounds = array<i64: 1>, scalar_prefetch = 0 : i64, scratch_operands = 0 : i64, tpu.core_type = #tpu.core_type<tc>, window_params = [{transform_indices = @transform_0, window_bounds = array<i64: 9, 3>}, {transform_indices = @transform_1, window_bounds = array<i64: 2, 2>}, {transform_indices = @transform_2, window_bounds = array<i64: 16, 128>}, {transform_indices = @transform_3, window_bounds = array<i64: 16, 128>}, {transform_indices = @transform_4, window_bounds = array<i64: 16, 128>}, {transform_indices = @transform_5, window_bounds = array<i64: 16, 128>}, {pipeline_mode = #tpu.pipeline_mode<synchronous>, transform_indices = @transform_6, window_bounds = array<i64: 9, 128, 128>}, {pipeline_mode = #tpu.pipeline_mode<synchronous>, transform_indices = @transform_7, window_bounds = array<i64: 9, 1, 128>}, {transform_indices = @transform_8, window_bounds = array<i64: 2, 16, 128>}]} {
    %c0 = arith.constant 0 : index
    %c0_0 = arith.constant 0 : index
    %0 = vector.load %arg3[%c0, %c0_0] : memref<16x128xf32, #tpu.memory_space<vmem>>, vector<16x128xf32>
    %c0_1 = arith.constant 0 : index
    %c0_2 = arith.constant 0 : index
    %1 = vector.load %arg4[%c0_1, %c0_2] : memref<16x128xf32, #tpu.memory_space<vmem>>, vector<16x128xf32>
    %c0_3 = arith.constant 0 : index
    %c0_4 = arith.constant 0 : index
    %2 = vector.load %arg5[%c0_3, %c0_4] : memref<16x128xf32, #tpu.memory_space<vmem>>, vector<16x128xf32>
    %c0_5 = arith.constant 0 : index
    %c0_6 = arith.constant 0 : index
    %3 = vector.load %arg6[%c0_5, %c0_6] : memref<16x128xf32, #tpu.memory_space<vmem>>, vector<16x128xf32>
    %c0_7 = arith.constant 0 : index
    %c0_8 = arith.constant 0 : index
    %c0_9 = arith.constant 0 : index
    %4 = vector.load %arg7[%c0_7, %c0_8, %c0_9] : memref<9x128x128xf32, #tpu.memory_space<vmem>>, vector<1x128x128xf32>
    %5 = vector.shape_cast %4 : vector<1x128x128xf32> to vector<128x128xf32>
    %cst = arith.constant dense<0.000000e+00> : vector<16x128xf32>
    %6 = tpu.matmul %0, %5, %cst {dimension_numbers = #tpu.dot_dimension_numbers<[1], [0], [0], [1], [0, 0, 1, 1], [], []>} : vector<16x128xf32>, vector<128x128xf32>, vector<16x128xf32> -> vector<16x128xf32>
    %c0_10 = arith.constant 0 : index
    %c0_11 = arith.constant 0 : index
    %c0_12 = arith.constant 0 : index
    %7 = vector.load %arg8[%c0_10, %c0_11, %c0_12] : memref<9x1x128xf32, #tpu.memory_space<vmem>>, vector<1x1x128xf32>
    %8 = vector.shape_cast %7 : vector<1x1x128xf32> to vector<1x128xf32>
    %9 = vector.broadcast %8 : vector<1x128xf32> to vector<16x128xf32>
    %10 = arith.addf %6, %9 : vector<16x128xf32>
    %c0_13 = arith.constant 0 : index
    %c1 = arith.constant 1 : index
    %11 = memref.load %arg1[%c0_13, %c1] : memref<9x3xf32, #tpu.memory_space<smem>>
    %12 = vector.broadcast %11 : f32 to vector<16x128xf32>
    %13 = arith.mulf %12, %0 : vector<16x128xf32>
    %c0_14 = arith.constant 0 : index
    %c2 = arith.constant 2 : index
    %14 = memref.load %arg1[%c0_14, %c2] : memref<9x3xf32, #tpu.memory_space<smem>>
    %cst_15 = arith.constant 0.000000e+00 : f32
    %15 = vector.broadcast %cst_15 : f32 to vector<16x128xf32>
    %16 = arith.maximumf %10, %15 : vector<16x128xf32>
    %17 = vector.broadcast %14 : f32 to vector<16x128xf32>
    %18 = arith.mulf %17, %16 : vector<16x128xf32>
    %19 = arith.addf %13, %18 : vector<16x128xf32>
    %c1_16 = arith.constant 1 : index
    %c0_17 = arith.constant 0 : index
    %c0_18 = arith.constant 0 : index
    %20 = vector.load %arg7[%c1_16, %c0_17, %c0_18] : memref<9x128x128xf32, #tpu.memory_space<vmem>>, vector<1x128x128xf32>
    %21 = vector.shape_cast %20 : vector<1x128x128xf32> to vector<128x128xf32>
    %cst_19 = arith.constant dense<0.000000e+00> : vector<16x128xf32>
    %22 = tpu.matmul %1, %21, %cst_19 {dimension_numbers = #tpu.dot_dimension_numbers<[1], [0], [0], [1], [0, 0, 1, 1], [], []>} : vector<16x128xf32>, vector<128x128xf32>, vector<16x128xf32> -> vector<16x128xf32>
    %c1_20 = arith.constant 1 : index
    %c0_21 = arith.constant 0 : index
    %c0_22 = arith.constant 0 : index
    %23 = vector.load %arg8[%c1_20, %c0_21, %c0_22] : memref<9x1x128xf32, #tpu.memory_space<vmem>>, vector<1x1x128xf32>
    %24 = vector.shape_cast %23 : vector<1x1x128xf32> to vector<1x128xf32>
    %25 = vector.broadcast %24 : vector<1x128xf32> to vector<16x128xf32>
    %26 = arith.addf %22, %25 : vector<16x128xf32>
    %c1_23 = arith.constant 1 : index
    %c1_24 = arith.constant 1 : index
    %27 = memref.load %arg1[%c1_23, %c1_24] : memref<9x3xf32, #tpu.memory_space<smem>>
    %28 = vector.broadcast %27 : f32 to vector<16x128xf32>
    %29 = arith.mulf %28, %1 : vector<16x128xf32>
    %c1_25 = arith.constant 1 : index
    %c2_26 = arith.constant 2 : index
    %30 = memref.load %arg1[%c1_25, %c2_26] : memref<9x3xf32, #tpu.memory_space<smem>>
    %cst_27 = arith.constant 0.000000e+00 : f32
    %31 = vector.broadcast %cst_27 : f32 to vector<16x128xf32>
    %32 = arith.maximumf %26, %31 : vector<16x128xf32>
    %33 = vector.broadcast %30 : f32 to vector<16x128xf32>
    %34 = arith.mulf %33, %32 : vector<16x128xf32>
    %35 = arith.addf %29, %34 : vector<16x128xf32>
    %36 = arith.addf %19, %35 : vector<16x128xf32>
    %37 = arith.maximumf %19, %35 : vector<16x128xf32>
    %c2_28 = arith.constant 2 : index
    %c0_29 = arith.constant 0 : index
    %c0_30 = arith.constant 0 : index
    %38 = vector.load %arg7[%c2_28, %c0_29, %c0_30] : memref<9x128x128xf32, #tpu.memory_space<vmem>>, vector<1x128x128xf32>
    %39 = vector.shape_cast %38 : vector<1x128x128xf32> to vector<128x128xf32>
    %cst_31 = arith.constant dense<0.000000e+00> : vector<16x128xf32>
    %40 = tpu.matmul %2, %39, %cst_31 {dimension_numbers = #tpu.dot_dimension_numbers<[1], [0], [0], [1], [0, 0, 1, 1], [], []>} : vector<16x128xf32>, vector<128x128xf32>, vector<16x128xf32> -> vector<16x128xf32>
    %c2_32 = arith.constant 2 : index
    %c0_33 = arith.constant 0 : index
    %c0_34 = arith.constant 0 : index
    %41 = vector.load %arg8[%c2_32, %c0_33, %c0_34] : memref<9x1x128xf32, #tpu.memory_space<vmem>>, vector<1x1x128xf32>
    %42 = vector.shape_cast %41 : vector<1x1x128xf32> to vector<1x128xf32>
    %43 = vector.broadcast %42 : vector<1x128xf32> to vector<16x128xf32>
    %44 = arith.addf %40, %43 : vector<16x128xf32>
    %c2_35 = arith.constant 2 : index
    %c1_36 = arith.constant 1 : index
    %45 = memref.load %arg1[%c2_35, %c1_36] : memref<9x3xf32, #tpu.memory_space<smem>>
    %46 = vector.broadcast %45 : f32 to vector<16x128xf32>
    %47 = arith.mulf %46, %2 : vector<16x128xf32>
    %c2_37 = arith.constant 2 : index
    %c2_38 = arith.constant 2 : index
    %48 = memref.load %arg1[%c2_37, %c2_38] : memref<9x3xf32, #tpu.memory_space<smem>>
    %cst_39 = arith.constant 0.000000e+00 : f32
    %49 = vector.broadcast %cst_39 : f32 to vector<16x128xf32>
    %50 = arith.maximumf %44, %49 : vector<16x128xf32>
    %51 = vector.broadcast %48 : f32 to vector<16x128xf32>
    %52 = arith.mulf %51, %50 : vector<16x128xf32>
    %53 = arith.addf %47, %52 : vector<16x128xf32>
    %54 = arith.addf %36, %53 : vector<16x128xf32>
    %55 = arith.maximumf %37, %53 : vector<16x128xf32>
    %c3 = arith.constant 3 : index
    %c0_40 = arith.constant 0 : index
    %c0_41 = arith.constant 0 : index
    %56 = vector.load %arg7[%c3, %c0_40, %c0_41] : memref<9x128x128xf32, #tpu.memory_space<vmem>>, vector<1x128x128xf32>
    %57 = vector.shape_cast %56 : vector<1x128x128xf32> to vector<128x128xf32>
    %cst_42 = arith.constant dense<0.000000e+00> : vector<16x128xf32>
    %58 = tpu.matmul %3, %57, %cst_42 {dimension_numbers = #tpu.dot_dimension_numbers<[1], [0], [0], [1], [0, 0, 1, 1], [], []>} : vector<16x128xf32>, vector<128x128xf32>, vector<16x128xf32> -> vector<16x128xf32>
    %c3_43 = arith.constant 3 : index
    %c0_44 = arith.constant 0 : index
    %c0_45 = arith.constant 0 : index
    %59 = vector.load %arg8[%c3_43, %c0_44, %c0_45] : memref<9x1x128xf32, #tpu.memory_space<vmem>>, vector<1x1x128xf32>
    %60 = vector.shape_cast %59 : vector<1x1x128xf32> to vector<1x128xf32>
    %61 = vector.broadcast %60 : vector<1x128xf32> to vector<16x128xf32>
    %62 = arith.addf %58, %61 : vector<16x128xf32>
    %c3_46 = arith.constant 3 : index
    %c1_47 = arith.constant 1 : index
    %63 = memref.load %arg1[%c3_46, %c1_47] : memref<9x3xf32, #tpu.memory_space<smem>>
    %64 = vector.broadcast %63 : f32 to vector<16x128xf32>
    %65 = arith.mulf %64, %3 : vector<16x128xf32>
    %c3_48 = arith.constant 3 : index
    %c2_49 = arith.constant 2 : index
    %66 = memref.load %arg1[%c3_48, %c2_49] : memref<9x3xf32, #tpu.memory_space<smem>>
    %cst_50 = arith.constant 0.000000e+00 : f32
    %67 = vector.broadcast %cst_50 : f32 to vector<16x128xf32>
    %68 = arith.maximumf %62, %67 : vector<16x128xf32>
    %69 = vector.broadcast %66 : f32 to vector<16x128xf32>
    %70 = arith.mulf %69, %68 : vector<16x128xf32>
    %71 = arith.addf %65, %70 : vector<16x128xf32>
    %72 = arith.addf %54, %71 : vector<16x128xf32>
    %73 = arith.maximumf %55, %71 : vector<16x128xf32>
    %c0_51 = arith.constant 0 : index
    %c0_52 = arith.constant 0 : index
    %74 = memref.load %arg2[%c0_51, %c0_52] : memref<2x2xf32, #tpu.memory_space<smem>>
    %75 = vector.broadcast %74 : f32 to vector<16x128xf32>
    %76 = arith.mulf %75, %72 : vector<16x128xf32>
    %c0_53 = arith.constant 0 : index
    %c1_54 = arith.constant 1 : index
    %77 = memref.load %arg2[%c0_53, %c1_54] : memref<2x2xf32, #tpu.memory_space<smem>>
    %78 = vector.broadcast %77 : f32 to vector<16x128xf32>
    %79 = arith.mulf %78, %73 : vector<16x128xf32>
    %80 = arith.addf %76, %79 : vector<16x128xf32>
    %c0_55 = arith.constant 0 : index
    %c0_56 = arith.constant 0 : index
    %c0_57 = arith.constant 0 : index
    %81 = vector.load %arg9[%c0_55, %c0_56, %c0_57] : memref<2x16x128xf32, #tpu.memory_space<vmem>>, vector<1x16x128xf32>
    %82 = vector.shape_cast %81 : vector<1x16x128xf32> to vector<16x128xf32>
    %83 = vector.shape_cast %80 : vector<16x128xf32> to vector<1x16x128xf32>
    tpu.vector_store %arg9[%c0_55, %c0_56, %c0_57], %83 {strides = array<i32>} : memref<2x16x128xf32, #tpu.memory_space<vmem>>, vector<1x16x128xf32>,
    %c4 = arith.constant 4 : index
    %c0_58 = arith.constant 0 : index
    %c0_59 = arith.constant 0 : index
    %84 = vector.load %arg7[%c4, %c0_58, %c0_59] : memref<9x128x128xf32, #tpu.memory_space<vmem>>, vector<1x128x128xf32>
    %85 = vector.shape_cast %84 : vector<1x128x128xf32> to vector<128x128xf32>
    %cst_60 = arith.constant dense<0.000000e+00> : vector<16x128xf32>
    %86 = tpu.matmul %0, %85, %cst_60 {dimension_numbers = #tpu.dot_dimension_numbers<[1], [0], [0], [1], [0, 0, 1, 1], [], []>} : vector<16x128xf32>, vector<128x128xf32>, vector<16x128xf32> -> vector<16x128xf32>
    %c4_61 = arith.constant 4 : index
    %c0_62 = arith.constant 0 : index
    %c0_63 = arith.constant 0 : index
    %87 = vector.load %arg8[%c4_61, %c0_62, %c0_63] : memref<9x1x128xf32, #tpu.memory_space<vmem>>, vector<1x1x128xf32>
    %88 = vector.shape_cast %87 : vector<1x1x128xf32> to vector<1x128xf32>
    %89 = vector.broadcast %88 : vector<1x128xf32> to vector<16x128xf32>
    %90 = arith.addf %86, %89 : vector<16x128xf32>
    %c4_64 = arith.constant 4 : index
    %c1_65 = arith.constant 1 : index
    %91 = memref.load %arg1[%c4_64, %c1_65] : memref<9x3xf32, #tpu.memory_space<smem>>
    %92 = vector.broadcast %91 : f32 to vector<16x128xf32>
    %93 = arith.mulf %92, %0 : vector<16x128xf32>
    %c4_66 = arith.constant 4 : index
    %c2_67 = arith.constant 2 : index
    %94 = memref.load %arg1[%c4_66, %c2_67] : memref<9x3xf32, #tpu.memory_space<smem>>
    %cst_68 = arith.constant 0.000000e+00 : f32
    %95 = vector.broadcast %cst_68 : f32 to vector<16x128xf32>
    %96 = arith.maximumf %90, %95 : vector<16x128xf32>
    %97 = vector.broadcast %94 : f32 to vector<16x128xf32>
    %98 = arith.mulf %97, %96 : vector<16x128xf32>
    %99 = arith.addf %93, %98 : vector<16x128xf32>
    %c5 = arith.constant 5 : index
    %c0_69 = arith.constant 0 : index
    %c0_70 = arith.constant 0 : index
    %100 = vector.load %arg7[%c5, %c0_69, %c0_70] : memref<9x128x128xf32, #tpu.memory_space<vmem>>, vector<1x128x128xf32>
    %101 = vector.shape_cast %100 : vector<1x128x128xf32> to vector<128x128xf32>
    %cst_71 = arith.constant dense<0.000000e+00> : vector<16x128xf32>
    %102 = tpu.matmul %1, %101, %cst_71 {dimension_numbers = #tpu.dot_dimension_numbers<[1], [0], [0], [1], [0, 0, 1, 1], [], []>} : vector<16x128xf32>, vector<128x128xf32>, vector<16x128xf32> -> vector<16x128xf32>
    %c5_72 = arith.constant 5 : index
    %c0_73 = arith.constant 0 : index
    %c0_74 = arith.constant 0 : index
    %103 = vector.load %arg8[%c5_72, %c0_73, %c0_74] : memref<9x1x128xf32, #tpu.memory_space<vmem>>, vector<1x1x128xf32>
    %104 = vector.shape_cast %103 : vector<1x1x128xf32> to vector<1x128xf32>
    %105 = vector.broadcast %104 : vector<1x128xf32> to vector<16x128xf32>
    %106 = arith.addf %102, %105 : vector<16x128xf32>
    %c5_75 = arith.constant 5 : index
    %c1_76 = arith.constant 1 : index
    %107 = memref.load %arg1[%c5_75, %c1_76] : memref<9x3xf32, #tpu.memory_space<smem>>
    %108 = vector.broadcast %107 : f32 to vector<16x128xf32>
    %109 = arith.mulf %108, %1 : vector<16x128xf32>
    %c5_77 = arith.constant 5 : index
    %c2_78 = arith.constant 2 : index
    %110 = memref.load %arg1[%c5_77, %c2_78] : memref<9x3xf32, #tpu.memory_space<smem>>
    %cst_79 = arith.constant 0.000000e+00 : f32
    %111 = vector.broadcast %cst_79 : f32 to vector<16x128xf32>
    %112 = arith.maximumf %106, %111 : vector<16x128xf32>
    %113 = vector.broadcast %110 : f32 to vector<16x128xf32>
    %114 = arith.mulf %113, %112 : vector<16x128xf32>
    %115 = arith.addf %109, %114 : vector<16x128xf32>
    %116 = arith.addf %99, %115 : vector<16x128xf32>
    %117 = arith.maximumf %99, %115 : vector<16x128xf32>
    %c6 = arith.constant 6 : index
    %c0_80 = arith.constant 0 : index
    %c0_81 = arith.constant 0 : index
    %118 = vector.load %arg7[%c6, %c0_80, %c0_81] : memref<9x128x128xf32, #tpu.memory_space<vmem>>, vector<1x128x128xf32>
    %119 = vector.shape_cast %118 : vector<1x128x128xf32> to vector<128x128xf32>
    %cst_82 = arith.constant dense<0.000000e+00> : vector<16x128xf32>
    %120 = tpu.matmul %2, %119, %cst_82 {dimension_numbers = #tpu.dot_dimension_numbers<[1], [0], [0], [1], [0, 0, 1, 1], [], []>} : vector<16x128xf32>, vector<128x128xf32>, vector<16x128xf32> -> vector<16x128xf32>
    %c6_83 = arith.constant 6 : index
    %c0_84 = arith.constant 0 : index
    %c0_85 = arith.constant 0 : index
    %121 = vector.load %arg8[%c6_83, %c0_84, %c0_85] : memref<9x1x128xf32, #tpu.memory_space<vmem>>, vector<1x1x128xf32>
    %122 = vector.shape_cast %121 : vector<1x1x128xf32> to vector<1x128xf32>
    %123 = vector.broadcast %122 : vector<1x128xf32> to vector<16x128xf32>
    %124 = arith.addf %120, %123 : vector<16x128xf32>
    %c6_86 = arith.constant 6 : index
    %c1_87 = arith.constant 1 : index
    %125 = memref.load %arg1[%c6_86, %c1_87] : memref<9x3xf32, #tpu.memory_space<smem>>
    %126 = vector.broadcast %125 : f32 to vector<16x128xf32>
    %127 = arith.mulf %126, %2 : vector<16x128xf32>
    %c6_88 = arith.constant 6 : index
    %c2_89 = arith.constant 2 : index
    %128 = memref.load %arg1[%c6_88, %c2_89] : memref<9x3xf32, #tpu.memory_space<smem>>
    %cst_90 = arith.constant 0.000000e+00 : f32
    %129 = vector.broadcast %cst_90 : f32 to vector<16x128xf32>
    %130 = arith.maximumf %124, %129 : vector<16x128xf32>
    %131 = vector.broadcast %128 : f32 to vector<16x128xf32>
    %132 = arith.mulf %131, %130 : vector<16x128xf32>
    %133 = arith.addf %127, %132 : vector<16x128xf32>
    %134 = arith.addf %116, %133 : vector<16x128xf32>
    %135 = arith.maximumf %117, %133 : vector<16x128xf32>
    %c7 = arith.constant 7 : index
    %c0_91 = arith.constant 0 : index
    %c0_92 = arith.constant 0 : index
    %136 = vector.load %arg7[%c7, %c0_91, %c0_92] : memref<9x128x128xf32, #tpu.memory_space<vmem>>, vector<1x128x128xf32>
    %137 = vector.shape_cast %136 : vector<1x128x128xf32> to vector<128x128xf32>
    %cst_93 = arith.constant dense<0.000000e+00> : vector<16x128xf32>
    %138 = tpu.matmul %3, %137, %cst_93 {dimension_numbers = #tpu.dot_dimension_numbers<[1], [0], [0], [1], [0, 0, 1, 1], [], []>} : vector<16x128xf32>, vector<128x128xf32>, vector<16x128xf32> -> vector<16x128xf32>
    %c7_94 = arith.constant 7 : index
    %c0_95 = arith.constant 0 : index
    %c0_96 = arith.constant 0 : index
    %139 = vector.load %arg8[%c7_94, %c0_95, %c0_96] : memref<9x1x128xf32, #tpu.memory_space<vmem>>, vector<1x1x128xf32>
    %140 = vector.shape_cast %139 : vector<1x1x128xf32> to vector<1x128xf32>
    %141 = vector.broadcast %140 : vector<1x128xf32> to vector<16x128xf32>
    %142 = arith.addf %138, %141 : vector<16x128xf32>
    %c7_97 = arith.constant 7 : index
    %c1_98 = arith.constant 1 : index
    %143 = memref.load %arg1[%c7_97, %c1_98] : memref<9x3xf32, #tpu.memory_space<smem>>
    %144 = vector.broadcast %143 : f32 to vector<16x128xf32>
    %145 = arith.mulf %144, %3 : vector<16x128xf32>
    %c7_99 = arith.constant 7 : index
    %c2_100 = arith.constant 2 : index
    %146 = memref.load %arg1[%c7_99, %c2_100] : memref<9x3xf32, #tpu.memory_space<smem>>
    %cst_101 = arith.constant 0.000000e+00 : f32
    %147 = vector.broadcast %cst_101 : f32 to vector<16x128xf32>
    %148 = arith.maximumf %142, %147 : vector<16x128xf32>
    %149 = vector.broadcast %146 : f32 to vector<16x128xf32>
    %150 = arith.mulf %149, %148 : vector<16x128xf32>
    %151 = arith.addf %145, %150 : vector<16x128xf32>
    %152 = arith.addf %134, %151 : vector<16x128xf32>
    %153 = arith.maximumf %135, %151 : vector<16x128xf32>
    %c8 = arith.constant 8 : index
    %c0_102 = arith.constant 0 : index
    %c0_103 = arith.constant 0 : index
    %154 = vector.load %arg7[%c8, %c0_102, %c0_103] : memref<9x128x128xf32, #tpu.memory_space<vmem>>, vector<1x128x128xf32>
    %155 = vector.shape_cast %154 : vector<1x128x128xf32> to vector<128x128xf32>
    %cst_104 = arith.constant dense<0.000000e+00> : vector<16x128xf32>
    %156 = tpu.matmul %80, %155, %cst_104 {dimension_numbers = #tpu.dot_dimension_numbers<[1], [0], [0], [1], [0, 0, 1, 1], [], []>} : vector<16x128xf32>, vector<128x128xf32>, vector<16x128xf32> -> vector<16x128xf32>
    %c8_105 = arith.constant 8 : index
    %c0_106 = arith.constant 0 : index
    %c0_107 = arith.constant 0 : index
    %157 = vector.load %arg8[%c8_105, %c0_106, %c0_107] : memref<9x1x128xf32, #tpu.memory_space<vmem>>, vector<1x1x128xf32>
    %158 = vector.shape_cast %157 : vector<1x1x128xf32> to vector<1x128xf32>
    %159 = vector.broadcast %158 : vector<1x128xf32> to vector<16x128xf32>
    %160 = arith.addf %156, %159 : vector<16x128xf32>
    %c8_108 = arith.constant 8 : index
    %c1_109 = arith.constant 1 : index
    %161 = memref.load %arg1[%c8_108, %c1_109] : memref<9x3xf32, #tpu.memory_space<smem>>
    %162 = vector.broadcast %161 : f32 to vector<16x128xf32>
    %163 = arith.mulf %162, %80 : vector<16x128xf32>
    %c8_110 = arith.constant 8 : index
    %c2_111 = arith.constant 2 : index
    %164 = memref.load %arg1[%c8_110, %c2_111] : memref<9x3xf32, #tpu.memory_space<smem>>
    %cst_112 = arith.constant 0.000000e+00 : f32
    %165 = vector.broadcast %cst_112 : f32 to vector<16x128xf32>
    %166 = arith.maximumf %160, %165 : vector<16x128xf32>
    %167 = vector.broadcast %164 : f32 to vector<16x128xf32>
    %168 = arith.mulf %167, %166 : vector<16x128xf32>
    %169 = arith.addf %163, %168 : vector<16x128xf32>
    %170 = arith.addf %152, %169 : vector<16x128xf32>
    %171 = arith.maximumf %153, %169 : vector<16x128xf32>
    %c1_113 = arith.constant 1 : index
    %c0_114 = arith.constant 0 : index
    %172 = memref.load %arg2[%c1_113, %c0_114] : memref<2x2xf32, #tpu.memory_space<smem>>
    %173 = vector.broadcast %172 : f32 to vector<16x128xf32>
    %174 = arith.mulf %173, %170 : vector<16x128xf32>
    %c1_115 = arith.constant 1 : index
    %c1_116 = arith.constant 1 : index
    %175 = memref.load %arg2[%c1_115, %c1_116] : memref<2x2xf32, #tpu.memory_space<smem>>
    %176 = vector.broadcast %175 : f32 to vector<16x128xf32>
    %177 = arith.mulf %176, %171 : vector<16x128xf32>
    %178 = arith.addf %174, %177 : vector<16x128xf32>
    %c1_117 = arith.constant 1 : index
    %c0_118 = arith.constant 0 : index
    %c0_119 = arith.constant 0 : index
    %179 = vector.load %arg9[%c1_117, %c0_118, %c0_119] : memref<2x16x128xf32, #tpu.memory_space<vmem>>, vector<1x16x128xf32>
    %180 = vector.shape_cast %179 : vector<1x16x128xf32> to vector<16x128xf32>
    %181 = vector.shape_cast %178 : vector<16x128xf32> to vector<1x16x128xf32>
    tpu.vector_store %arg9[%c1_117, %c0_118, %c0_119], %181 {strides = array<i32>} : memref<2x16x128xf32, #tpu.memory_space<vmem>>, vector<1x16x128xf32>,
    return
  }
  func.func @transform_0(%arg0: i32) -> (i32, i32) {
    %c0_i32 = arith.constant 0 : i32
    %c0_i32_0 = arith.constant 0 : i32
    %c0_i32_1 = arith.constant 0 : i32
    return %c0_i32, %c0_i32_0 : i32, i32
  }
  func.func @transform_1(%arg0: i32) -> (i32, i32) {
    %c0_i32 = arith.constant 0 : i32
    %c0_i32_0 = arith.constant 0 : i32
    %c0_i32_1 = arith.constant 0 : i32
    return %c0_i32, %c0_i32_0 : i32, i32
  }
  func.func @transform_2(%arg0: i32) -> (i32, i32) {
    %c0_i32 = arith.constant 0 : i32
    %c0_i32_0 = arith.constant 0 : i32
    return %arg0, %c0_i32 : i32, i32
  }
  func.func @transform_3(%arg0: i32) -> (i32, i32) {
    %c0_i32 = arith.constant 0 : i32
    %c0_i32_0 = arith.constant 0 : i32
    return %arg0, %c0_i32 : i32, i32
  }
  func.func @transform_4(%arg0: i32) -> (i32, i32) {
    %c0_i32 = arith.constant 0 : i32
    %c0_i32_0 = arith.constant 0 : i32
    return %arg0, %c0_i32 : i32, i32
  }
  func.func @transform_5(%arg0: i32) -> (i32, i32) {
    %c0_i32 = arith.constant 0 : i32
    %c0_i32_0 = arith.constant 0 : i32
    return %arg0, %c0_i32 : i32, i32
  }
  func.func @transform_6(%arg0: i32) -> (i32, i32, i32) {
    %c0_i32 = arith.constant 0 : i32
    %c0_i32_0 = arith.constant 0 : i32
    %c0_i32_1 = arith.constant 0 : i32
    %c0_i32_2 = arith.constant 0 : i32
    return %c0_i32, %c0_i32_0, %c0_i32_1 : i32, i32, i32
  }
  func.func @transform_7(%arg0: i32) -> (i32, i32, i32) {
    %c0_i32 = arith.constant 0 : i32
    %c0_i32_0 = arith.constant 0 : i32
    %c0_i32_1 = arith.constant 0 : i32
    %c0_i32_2 = arith.constant 0 : i32
    return %c0_i32, %c0_i32_0, %c0_i32_1 : i32, i32, i32
  }
  func.func @transform_8(%arg0: i32) -> (i32, i32, i32) {
    %c0_i32 = arith.constant 0 : i32
    %c0_i32_0 = arith.constant 0 : i32
    %c0_i32_1 = arith.constant 0 : i32
    return %c0_i32, %arg0, %c0_i32_0 : i32, i32, i32
  }
}

</mosaic_0001>

<llo_original>
// kernel: tpu_custom_call.1
$region0: #{tpu_custom_call.1}
  #allocation0 [shape = 'u32[]', space=smem, size = 0x4, offset = 0x4, fixed_abs, tag = 'smem constant byte address 0x4 - core index']
  #allocation1 [shape = 'u32[72,128]{1,0:T(1,128)}', space=vmem, size = 0x9000, scoped, tag = 'internal scratch']
  %s0 = inlined_call_operand.vmem [shape: f32[9,3], index: 0, kind: input, shape index: {}]
  %s1 = inlined_call_operand.hbm [shape: f32[2,2], index: 1, kind: input, shape index: {}]
  %s2 = inlined_call_operand.vmem [shape: f32[16,128], index: 2, kind: input, shape index: {}]
  %s3 = inlined_call_operand.hbm [shape: f32[16,128], index: 3, kind: input, shape index: {}]
  %s4 = inlined_call_operand.hbm [shape: f32[16,128], index: 4, kind: input, shape index: {}]
  %s5 = inlined_call_operand.hbm [shape: f32[16,128], index: 5, kind: input, shape index: {}]
  %s6 = inlined_call_operand.hbm [shape: f32[9,128,128], index: 6, kind: input, shape index: {}]
  %s7 = inlined_call_operand.vmem [shape: f32[9,1,128], index: 7, kind: input, shape index: {}]
  %s8 = inlined_call_operand.hbm [shape: f32[2,16,128], index: 8, kind: output, shape index: {}]
  %s9 = sld [smem:[#allocation0]]
  $region66: #{tpu_custom_call.1} parent=0
    _
  %s11 = ssub.s32 1, %s9
  %s12 = scalar_select 0, %s11, %s9
  $region1: #{tpu_custom_call.1} parent=0
    #allocation2 [shape = 'u8[8192]{0}', space=smem, size = 0x2000, scoped, tag = 'input window, operand 0, single buffered']
    #allocation3 [shape = 's32[1]{0}', space=sflag, size = 0x4, scoped, tag = 'scoped memory for tpu_custom_call.1']
    #allocation4 [shape = 's32[1]{0}', space=sflag, size = 0x4, scoped, tag = 'scoped memory for tpu_custom_call.1']
    #allocation5 [shape = 's32[1]{0}', space=sflag, size = 0x4, scoped, tag = 'scoped memory for tpu_custom_call.1']
    #allocation6 [shape = 's32[1]{0}', space=sflag, size = 0x4, scoped, tag = 'scoped memory for tpu_custom_call.1']
    #allocation7 [shape = 'u8[1024]{0}', space=smem, size = 0x400, scoped, tag = 'input window, operand 1, single buffered']
    #allocation8 [shape = 'u8[8192]{0}', space=vmem, size = 0x2000, scoped, tag = 'input window, operand 3, single buffered']
    #allocation9 [shape = 'u8[8192]{0}', space=vmem, size = 0x2000, scoped, tag = 'input window, operand 4, single buffered']
    #allocation10 [shape = 's32[1]{0}', space=sflag, size = 0x4, scoped, tag = 'scoped memory for tpu_custom_call.1']
    #allocation11 [shape = 'u8[8192]{0}', space=vmem, size = 0x2000, scoped, tag = 'input window, operand 5, single buffered']
    #allocation12 [shape = 'u8[589824]{0}', space=vmem, size = 0x90000, scoped, tag = 'input window, operand 6, single buffered']
    #allocation13 [shape = 's32[1]{0}', space=sflag, size = 0x4, scoped, tag = 'scoped memory for tpu_custom_call.1']
    #allocation14 [shape = 'u8[16384]{0}', space=vmem, size = 0x4000, scoped, tag = 'output window, operand 0, single buffered']
    %13 = vsyncpa [#allocation6], 0
    %14 = vsyncpa [#allocation5], 0
    %15 = vsyncpa [#allocation3], 0
    %16 = vsyncpa [#allocation10], 0
    %17 = vsyncpa [#allocation13], 0
    %18 = vsyncpa [#allocation4], 0
    // Predicated region
    $region2: #{tpu_custom_call.1} parent=1 // pred_check
      _
    $region3: #{tpu_custom_call.1} parent=1 // pred_check_branch
      %20 = sbr.rel (0) target = $region5
    $region4: #{tpu_custom_call.1} parent=1 // pred_region
      %22 = vsyncadd [#allocation6], 0
      %s23 = sshll.u32 %s0, 4
      %s24 = int_to_ptr.vmem [resolvable:$true] %s23
      %29 = dma.vmem_to_smem %s24, 256, [#allocation2], [#allocation6], 128, 128, 8
    $region5: #{tpu_custom_call.1} parent=1 // pred_fallthru
      _
    // Predicated region
    $region6: #{tpu_custom_call.1} parent=1 // pred_check
      _
    $region7: #{tpu_custom_call.1} parent=1 // pred_check_branch
      %31 = sbr.rel (0) target = $region9
    $region8: #{tpu_custom_call.1} parent=1 // pred_region
      %33 = vsyncadd [#allocation5], 0
      %s35 = sshll.u32 %s1, 4
      %s36 = int_to_ptr.hbm [resolvable:$true] %s35
      %38 = dma.hbm_to_smem %s36, 32, [#allocation7], [#allocation5]
    $region9: #{tpu_custom_call.1} parent=1 // pred_fallthru
      _
    // Predicated region
    $region10: #{tpu_custom_call.1} parent=1 // pred_check
      _
    $region11: #{tpu_custom_call.1} parent=1 // pred_check_branch
      %40 = sbr.rel (0) target = $region13
    $region12: #{tpu_custom_call.1} parent=1 // pred_region
      _
    $region13: #{tpu_custom_call.1} parent=1 // pred_fallthru
      _
    // Predicated region
    $region14: #{tpu_custom_call.1} parent=1 // pred_check
      _
    $region15: #{tpu_custom_call.1} parent=1 // pred_check_branch
      %42 = sbr.rel (0) target = $region17
    $region16: #{tpu_custom_call.1} parent=1 // pred_region
      %44 = vsyncadd [#allocation3], 0
      %s45 = sshll.u32 %s3, 4
      %s46 = int_to_ptr.hbm [resolvable:$true] %s45
      %s47 = sshll.u32 [#allocation8], 4
      %s48 = int_to_ptr.vmem [resolvable:$true] %s47
      %53 = dma.hbm_to_vmem [thread:$0]  %s46, 256, %s48, [#allocation3], 128, 128, 8
    $region17: #{tpu_custom_call.1} parent=1 // pred_fallthru
      _
    // Predicated region
    $region18: #{tpu_custom_call.1} parent=1 // pred_check
      _
    $region19: #{tpu_custom_call.1} parent=1 // pred_check_branch
      %55 = sbr.rel (0) target = $region21
    $region20: #{tpu_custom_call.1} parent=1 // pred_region
      %57 = vsyncadd [#allocation10], 0
      %s58 = sshll.u32 %s4, 4
      %s59 = int_to_ptr.hbm [resolvable:$true] %s58
      %s60 = sshll.u32 [#allocation9], 4
      %s61 = int_to_ptr.vmem [resolvable:$true] %s60
      %66 = dma.hbm_to_vmem [thread:$0]  %s59, 256, %s61, [#allocation10], 128, 128, 8
    $region21: #{tpu_custom_call.1} parent=1 // pred_fallthru
      _
    // Predicated region
    $region22: #{tpu_custom_call.1} parent=1 // pred_check
      _
    $region23: #{tpu_custom_call.1} parent=1 // pred_check_branch
      %68 = sbr.rel (0) target = $region25
    $region24: #{tpu_custom_call.1} parent=1 // pred_region
      %70 = vsyncadd [#allocation10], 0
      %s71 = sshll.u32 %s5, 4
      %s72 = int_to_ptr.hbm [resolvable:$true] %s71
      %s73 = sshll.u32 [#allocation11], 4
      %s74 = int_to_ptr.vmem [resolvable:$true] %s73
      %79 = dma.hbm_to_vmem [thread:$0]  %s72, 256, %s74, [#allocation10], 128, 128, 8
    $region25: #{tpu_custom_call.1} parent=1 // pred_fallthru
      _
    // Predicated region
    $region26: #{tpu_custom_call.1} parent=1 // pred_check
      _
    $region27: #{tpu_custom_call.1} parent=1 // pred_check_branch
      %81 = sbr.rel (0) target = $region29
    $region28: #{tpu_custom_call.1} parent=1 // pred_region
      %83 = vsyncadd [#allocation13], 0
      %s84 = sshll.u32 %s6, 4
      %s85 = int_to_ptr.hbm [resolvable:$true] %s84
      %s86 = sshll.u32 [#allocation12], 4
      %s87 = int_to_ptr.vmem [resolvable:$true] %s86
      %92 = dma.hbm_to_vmem [thread:$0]  %s85, 18432, %s87, [#allocation13], 128, 128, 8
    $region29: #{tpu_custom_call.1} parent=1 // pred_fallthru
      _
    // Predicated region
    $region30: #{tpu_custom_call.1} parent=1 // pred_check
      _
    $region31: #{tpu_custom_call.1} parent=1 // pred_check_branch
      %94 = sbr.rel (0) target = $region33
    $region32: #{tpu_custom_call.1} parent=1 // pred_region
      _
    $region33: #{tpu_custom_call.1} parent=1 // pred_fallthru
      _
    // Predicated region
    $region34: #{tpu_custom_call.1} parent=1 // pred_check
      _
    $region35: #{tpu_custom_call.1} parent=1 // pred_check_branch
      %96 = sbr.rel (0) target = $region37
    $region36: #{tpu_custom_call.1} parent=1 // pred_region
      %98 = dma.done [#allocation6], 256
    $region37: #{tpu_custom_call.1} parent=1 // pred_fallthru
      _
    // Predicated region
    $region38: #{tpu_custom_call.1} parent=1 // pred_check
      _
    $region39: #{tpu_custom_call.1} parent=1 // pred_check_branch
      %100 = sbr.rel (0) target = $region41
    $region40: #{tpu_custom_call.1} parent=1 // pred_region
      %102 = dma.done [#allocation5], 32
    $region41: #{tpu_custom_call.1} parent=1 // pred_fallthru
      _
    // Predicated region
    $region42: #{tpu_custom_call.1} parent=1 // pred_check
      _
    $region43: #{tpu_custom_call.1} parent=1 // pred_check_branch
      %104 = sbr.rel (0) target = $region45
    $region44: #{tpu_custom_call.1} parent=1 // pred_region
      %106 = dma.done [#allocation3], 256
    $region45: #{tpu_custom_call.1} parent=1 // pred_fallthru
      _
    // Predicated region
    $region46: #{tpu_custom_call.1} parent=1 // pred_check
      _
    $region47: #{tpu_custom_call.1} parent=1 // pred_check_branch
      %108 = sbr.rel (0) target = $region49
    $region48: #{tpu_custom_call.1} parent=1 // pred_region
      %110 = dma.done [#allocation10], 256
    $region49: #{tpu_custom_call.1} parent=1 // pred_fallthru
      _
    // Predicated region
    $region50: #{tpu_custom_call.1} parent=1 // pred_check
      _
    $region51: #{tpu_custom_call.1} parent=1 // pred_check_branch
      %112 = sbr.rel (0) target = $region53
    $region52: #{tpu_custom_call.1} parent=1 // pred_region
      %114 = dma.done [#allocation10], 256
    $region53: #{tpu_custom_call.1} parent=1 // pred_fallthru
      _
    // Predicated region
    $region54: #{tpu_custom_call.1} parent=1 // pred_check
      _
    $region55: #{tpu_custom_call.1} parent=1 // pred_check_branch
      %116 = sbr.rel (0) target = $region57
    $region56: #{tpu_custom_call.1} parent=1 // pred_region
      %118 = dma.done [#allocation13], 18432
    $region57: #{tpu_custom_call.1} parent=1 // pred_fallthru
      _
    %119 = sfence
    %v120 = vld [vmem:[%s2] sm:$0xff]
    %v121 = vld [vmem:[%s2 + $0x8] sm:$0xff]
    %v122 = vld [vmem:[#allocation8] sm:$0xff]
    %v123 = vld [vmem:[#allocation8 + $0x8] sm:$0xff]
    %v124 = vld [vmem:[#allocation9] sm:$0xff]
    %v125 = vld [vmem:[#allocation9 + $0x8] sm:$0xff]
    %v126 = vld [vmem:[#allocation11] sm:$0xff]
    %v127 = vld [vmem:[#allocation11 + $0x8] sm:$0xff]
    %v128 = vld [vmem:[#allocation12] sm:$0xff]
    %v129 = vld [vmem:[#allocation12 + $0x8] sm:$0xff]
    %v130 = vld [vmem:[#allocation12 + $0x10] sm:$0xff]
    %v131 = vld [vmem:[#allocation12 + $0x18] sm:$0xff]
    %v132 = vld [vmem:[#allocation12 + $0x20] sm:$0xff]
    %v133 = vld [vmem:[#allocation12 + $0x28] sm:$0xff]
    %v134 = vld [vmem:[#allocation12 + $0x30] sm:$0xff]
    %v135 = vld [vmem:[#allocation12 + $0x38] sm:$0xff]
    %v136 = vld [vmem:[#allocation12 + $0x40] sm:$0xff]
    %v137 = vld [vmem:[#allocation12 + $0x48] sm:$0xff]
    %v138 = vld [vmem:[#allocation12 + $0x50] sm:$0xff]
    %v139 = vld [vmem:[#allocation12 + $0x58] sm:$0xff]
    %v140 = vld [vmem:[#allocation12 + $0x60] sm:$0xff]
    %v141 = vld [vmem:[#allocation12 + $0x68] sm:$0xff]
    %v142 = vld [vmem:[#allocation12 + $0x70] sm:$0xff]
    %v143 = vld [vmem:[#allocation12 + $0x78] sm:$0xff]
    %v144 = vld [vmem:[%s7] sm:$0x1]
    %v146 = vperm.slane %v144, 0
    %148 = vmatpush.msra.mxu0 %v143
    %149 = vmatpush.msra.mxu0 %v142
    %150 = vmatpush.msra.mxu0 %v141
    %151 = vmatpush.msra.mxu0 %v140
    %152 = vmatpush.msra.mxu0 %v139
    %153 = vmatpush.msra.mxu0 %v138
    %154 = vmatpush.msra.mxu0 %v137
    %155 = vmatpush.msra.mxu0 %v136
    %156 = vmatpush.msra.mxu0 %v135
    %157 = vmatpush.msra.mxu0 %v134
    %158 = vmatpush.msra.mxu0 %v133
    %159 = vmatpush.msra.mxu0 %v132
    %160 = vmatpush.msra.mxu0 %v131
    %161 = vmatpush.msra.mxu0 %v130
    %162 = vmatpush.msra.mxu0 %v129
    %163 = vmatpush.msra.mxu0 %v128
    %164 = vmatmul.f32.gmra.mxu0 %v120
    %v165 = vpop.f32.mrf.mxu0
    %v166 = vadd.f32 %v146, %v165
    %167 = vmatmul.f32.gmra.mxu0 %v121
    %v168 = vpop.f32.mrf.mxu0
    %v169 = vadd.f32 %v146, %v168
    %170 = vdwg.mxu0
    %s171 = sld [smem:[#allocation2 + $0x1]]
    %v172 = vstv %s171
    %v173 = vmul.f32 %v172, %v120
    %v174 = vmul.f32 %v172, %v121
    %s175 = sld [smem:[#allocation2 + $0x2]]
    %v176 = vmax.f32 %v166, 0.0
    %v177 = vmax.f32 %v169, 0.0
    %v178 = vstv %s175
    %v179 = vmul.f32 %v178, %v176
    %v180 = vmul.f32 %v178, %v177
    %v181 = vadd.f32 %v173, %v179
    %v182 = vadd.f32 %v174, %v180
    %s183 = scalar_lea.vmem [#allocation12], 128
    %v184 = vld [vmem:[%s183] sm:$0xff]
    %v185 = vld [vmem:[%s183 + $0x8] sm:$0xff]
    %v186 = vld [vmem:[%s183 + $0x10] sm:$0xff]
    %v187 = vld [vmem:[%s183 + $0x18] sm:$0xff]
    %v188 = vld [vmem:[%s183 + $0x20] sm:$0xff]
    %v189 = vld [vmem:[%s183 + $0x28] sm:$0xff]
    %v190 = vld [vmem:[%s183 + $0x30] sm:$0xff]
    %v191 = vld [vmem:[%s183 + $0x38] sm:$0xff]
    %v192 = vld [vmem:[%s183 + $0x40] sm:$0xff]
    %v193 = vld [vmem:[%s183 + $0x48] sm:$0xff]
    %v194 = vld [vmem:[%s183 + $0x50] sm:$0xff]
    %v195 = vld [vmem:[%s183 + $0x58] sm:$0xff]
    %v196 = vld [vmem:[%s183 + $0x60] sm:$0xff]
    %v197 = vld [vmem:[%s183 + $0x68] sm:$0xff]
    %v198 = vld [vmem:[%s183 + $0x70] sm:$0xff]
    %v199 = vld [vmem:[%s183 + $0x78] sm:$0xff]
    %s200 = scalar_lea.vmem %s7, 1
    %v201 = vld [vmem:[%s200] sm:$0x1]
    %v203 = vperm.slane %v201, 0
    %205 = vmatpush.msra.mxu0 %v199
    %206 = vmatpush.msra.mxu0 %v198
    %207 = vmatpush.msra.mxu0 %v197
    %208 = vmatpush.msra.mxu0 %v196
    %209 = vmatpush.msra.mxu0 %v195
    %210 = vmatpush.msra.mxu0 %v194
    %211 = vmatpush.msra.mxu0 %v193
    %212 = vmatpush.msra.mxu0 %v192
    %213 = vmatpush.msra.mxu0 %v191
    %214 = vmatpush.msra.mxu0 %v190
    %215 = vmatpush.msra.mxu0 %v189
    %216 = vmatpush.msra.mxu0 %v188
    %217 = vmatpush.msra.mxu0 %v187
    %218 = vmatpush.msra.mxu0 %v186
    %219 = vmatpush.msra.mxu0 %v185
    %220 = vmatpush.msra.mxu0 %v184
    %221 = vmatmul.f32.gmra.mxu0 %v122
    %v222 = vpop.f32.mrf.mxu0
    %v223 = vadd.f32 %v203, %v222
    %224 = vmatmul.f32.gmra.mxu0 %v123
    %v225 = vpop.f32.mrf.mxu0
    %v226 = vadd.f32 %v203, %v225
    %227 = vdwg.mxu0
    %s228 = sld [smem:[#allocation2 + $0x81]]
    %v229 = vstv %s228
    %v230 = vmul.f32 %v229, %v122
    %v231 = vmul.f32 %v229, %v123
    %s232 = sld [smem:[#allocation2 + $0x82]]
    %v233 = vmax.f32 %v223, 0.0
    %v234 = vmax.f32 %v226, 0.0
    %v235 = vstv %s232
    %v236 = vmul.f32 %v235, %v233
    %v237 = vmul.f32 %v235, %v234
    %v238 = vadd.f32 %v230, %v236
    %v239 = vadd.f32 %v231, %v237
    %v240 = vadd.f32 %v181, %v238
    %v241 = vadd.f32 %v182, %v239
    %v242 = vmax.f32 %v181, %v238
    %v243 = vmax.f32 %v182, %v239
    %s244 = scalar_lea.vmem [#allocation12], 256
    %v245 = vld [vmem:[%s244] sm:$0xff]
    %v246 = vld [vmem:[%s244 + $0x8] sm:$0xff]
    %v247 = vld [vmem:[%s244 + $0x10] sm:$0xff]
    %v248 = vld [vmem:[%s244 + $0x18] sm:$0xff]
    %v249 = vld [vmem:[%s244 + $0x20] sm:$0xff]
    %v250 = vld [vmem:[%s244 + $0x28] sm:$0xff]
    %v251 = vld [vmem:[%s244 + $0x30] sm:$0xff]
    %v252 = vld [vmem:[%s244 + $0x38] sm:$0xff]
    %v253 = vld [vmem:[%s244 + $0x40] sm:$0xff]
    %v254 = vld [vmem:[%s244 + $0x48] sm:$0xff]
    %v255 = vld [vmem:[%s244 + $0x50] sm:$0xff]
    %v256 = vld [vmem:[%s244 + $0x58] sm:$0xff]
    %v257 = vld [vmem:[%s244 + $0x60] sm:$0xff]
    %v258 = vld [vmem:[%s244 + $0x68] sm:$0xff]
    %v259 = vld [vmem:[%s244 + $0x70] sm:$0xff]
    %v260 = vld [vmem:[%s244 + $0x78] sm:$0xff]
    %s261 = scalar_lea.vmem %s7, 2
    %v262 = vld [vmem:[%s261] sm:$0x1]
    %v264 = vperm.slane %v262, 0
    %266 = vmatpush.msra.mxu0 %v260
    %267 = vmatpush.msra.mxu0 %v259
    %268 = vmatpush.msra.mxu0 %v258
    %269 = vmatpush.msra.mxu0 %v257
    %270 = vmatpush.msra.mxu0 %v256
    %271 = vmatpush.msra.mxu0 %v255
    %272 = vmatpush.msra.mxu0 %v254
    %273 = vmatpush.msra.mxu0 %v253
    %274 = vmatpush.msra.mxu0 %v252
    %275 = vmatpush.msra.mxu0 %v251
    %276 = vmatpush.msra.mxu0 %v250
    %277 = vmatpush.msra.mxu0 %v249
    %278 = vmatpush.msra.mxu0 %v248
    %279 = vmatpush.msra.mxu0 %v247
    %280 = vmatpush.msra.mxu0 %v246
    %281 = vmatpush.msra.mxu0 %v245
    %282 = vmatmul.f32.gmra.mxu0 %v124
    %v283 = vpop.f32.mrf.mxu0
    %v284 = vadd.f32 %v264, %v283
    %285 = vmatmul.f32.gmra.mxu0 %v125
    %v286 = vpop.f32.mrf.mxu0
    %v287 = vadd.f32 %v264, %v286
    %288 = vdwg.mxu0
    %s289 = sld [smem:[#allocation2 + $0x101]]
    %v290 = vstv %s289
    %v291 = vmul.f32 %v290, %v124
    %v292 = vmul.f32 %v290, %v125
    %s293 = sld [smem:[#allocation2 + $0x102]]
    %v294 = vmax.f32 %v284, 0.0
    %v295 = vmax.f32 %v287, 0.0
    %v296 = vstv %s293
    %v297 = vmul.f32 %v296, %v294
    %v298 = vmul.f32 %v296, %v295
    %v299 = vadd.f32 %v291, %v297
    %v300 = vadd.f32 %v292, %v298
    %v301 = vadd.f32 %v240, %v299
    %v302 = vadd.f32 %v241, %v300
    %v303 = vmax.f32 %v242, %v299
    %v304 = vmax.f32 %v243, %v300
    %s305 = scalar_lea.vmem [#allocation12], 384
    %v306 = vld [vmem:[%s305] sm:$0xff]
    %v307 = vld [vmem:[%s305 + $0x8] sm:$0xff]
    %v308 = vld [vmem:[%s305 + $0x10] sm:$0xff]
    %v309 = vld [vmem:[%s305 + $0x18] sm:$0xff]
    %v310 = vld [vmem:[%s305 + $0x20] sm:$0xff]
    %v311 = vld [vmem:[%s305 + $0x28] sm:$0xff]
    %v312 = vld [vmem:[%s305 + $0x30] sm:$0xff]
    %v313 = vld [vmem:[%s305 + $0x38] sm:$0xff]
    %v314 = vld [vmem:[%s305 + $0x40] sm:$0xff]
    %v315 = vld [vmem:[%s305 + $0x48] sm:$0xff]
    %v316 = vld [vmem:[%s305 + $0x50] sm:$0xff]
    %v317 = vld [vmem:[%s305 + $0x58] sm:$0xff]
    %v318 = vld [vmem:[%s305 + $0x60] sm:$0xff]
    %v319 = vld [vmem:[%s305 + $0x68] sm:$0xff]
    %v320 = vld [vmem:[%s305 + $0x70] sm:$0xff]
    %v321 = vld [vmem:[%s305 + $0x78] sm:$0xff]
    %s322 = scalar_lea.vmem %s7, 3
    %v323 = vld [vmem:[%s322] sm:$0x1]
    %v325 = vperm.slane %v323, 0
    %327 = vmatpush.msra.mxu0 %v321
    %328 = vmatpush.msra.mxu0 %v320
    %329 = vmatpush.msra.mxu0 %v319
    %330 = vmatpush.msra.mxu0 %v318
    %331 = vmatpush.msra.mxu0 %v317
    %332 = vmatpush.msra.mxu0 %v316
    %333 = vmatpush.msra.mxu0 %v315
    %334 = vmatpush.msra.mxu0 %v314
    %335 = vmatpush.msra.mxu0 %v313
    %336 = vmatpush.msra.mxu0 %v312
    %337 = vmatpush.msra.mxu0 %v311
    %338 = vmatpush.msra.mxu0 %v310
    %339 = vmatpush.msra.mxu0 %v309
    %340 = vmatpush.msra.mxu0 %v308
    %341 = vmatpush.msra.mxu0 %v307
    %342 = vmatpush.msra.mxu0 %v306
    %343 = vmatmul.f32.gmra.mxu0 %v126
    %v344 = vpop.f32.mrf.mxu0
    %v345 = vadd.f32 %v325, %v344
    %346 = vmatmul.f32.gmra.mxu0 %v127
    %v347 = vpop.f32.mrf.mxu0
    %v348 = vadd.f32 %v325, %v347
    %349 = vdwg.mxu0
    %s350 = sld [smem:[#allocation2 + $0x181]]
    %v351 = vstv %s350
    %v352 = vmul.f32 %v351, %v126
    %v353 = vmul.f32 %v351, %v127
    %s354 = sld [smem:[#allocation2 + $0x182]]
    %v355 = vmax.f32 %v345, 0.0
    %v356 = vmax.f32 %v348, 0.0
    %v357 = vstv %s354
    %v358 = vmul.f32 %v357, %v355
    %v359 = vmul.f32 %v357, %v356
    %v360 = vadd.f32 %v352, %v358
    %v361 = vadd.f32 %v353, %v359
    %v362 = vadd.f32 %v301, %v360
    %v363 = vadd.f32 %v302, %v361
    %v364 = vmax.f32 %v303, %v360
    %v365 = vmax.f32 %v304, %v361
    %s366 = sld [smem:[#allocation7]]
    %v367 = vstv %s366
    %v368 = vmul.f32 %v367, %v362
    %v369 = vmul.f32 %v367, %v363
    %s370 = sld [smem:[#allocation7 + $0x1]]
    %v371 = vstv %s370
    %v372 = vmul.f32 %v371, %v364
    %v373 = vmul.f32 %v371, %v365
    %v374 = vadd.f32 %v368, %v372
    %v375 = vadd.f32 %v369, %v373
    %376 = vst [vmem:[#allocation14] sm:$0xff] %v374
    %377 = vst [vmem:[#allocation14 + $0x8] sm:$0xff] %v375
    %s378 = scalar_lea.vmem [#allocation12], 512
    %v379 = vld [vmem:[%s378] sm:$0xff]
    %v380 = vld [vmem:[%s378 + $0x8] sm:$0xff]
    %v381 = vld [vmem:[%s378 + $0x10] sm:$0xff]
    %v382 = vld [vmem:[%s378 + $0x18] sm:$0xff]
    %v383 = vld [vmem:[%s378 + $0x20] sm:$0xff]
    %v384 = vld [vmem:[%s378 + $0x28] sm:$0xff]
    %v385 = vld [vmem:[%s378 + $0x30] sm:$0xff]
    %v386 = vld [vmem:[%s378 + $0x38] sm:$0xff]
    %v387 = vld [vmem:[%s378 + $0x40] sm:$0xff]
    %v388 = vld [vmem:[%s378 + $0x48] sm:$0xff]
    %v389 = vld [vmem:[%s378 + $0x50] sm:$0xff]
    %v390 = vld [vmem:[%s378 + $0x58] sm:$0xff]
    %v391 = vld [vmem:[%s378 + $0x60] sm:$0xff]
    %v392 = vld [vmem:[%s378 + $0x68] sm:$0xff]
    %v393 = vld [vmem:[%s378 + $0x70] sm:$0xff]
    %v394 = vld [vmem:[%s378 + $0x78] sm:$0xff]
    %s395 = scalar_lea.vmem %s7, 4
    %v396 = vld [vmem:[%s395] sm:$0x1]
    %v398 = vperm.slane %v396, 0
    %400 = vmatpush.msra.mxu0 %v394
    %401 = vmatpush.msra.mxu0 %v393
    %402 = vmatpush.msra.mxu0 %v392
    %403 = vmatpush.msra.mxu0 %v391
    %404 = vmatpush.msra.mxu0 %v390
    %405 = vmatpush.msra.mxu0 %v389
    %406 = vmatpush.msra.mxu0 %v388
    %407 = vmatpush.msra.mxu0 %v387
    %408 = vmatpush.msra.mxu0 %v386
    %409 = vmatpush.msra.mxu0 %v385
    %410 = vmatpush.msra.mxu0 %v384
    %411 = vmatpush.msra.mxu0 %v383
    %412 = vmatpush.msra.mxu0 %v382
    %413 = vmatpush.msra.mxu0 %v381
    %414 = vmatpush.msra.mxu0 %v380
    %415 = vmatpush.msra.mxu0 %v379
    %416 = vmatmul.f32.gmra.mxu0 %v120
    %v417 = vpop.f32.mrf.mxu0
    %v418 = vadd.f32 %v398, %v417
    %419 = vmatmul.f32.gmra.mxu0 %v121
    %v420 = vpop.f32.mrf.mxu0
    %v421 = vadd.f32 %v398, %v420
    %422 = vdwg.mxu0
    %s423 = sld [smem:[#allocation2 + $0x201]]
    %v424 = vstv %s423
    %v425 = vmul.f32 %v424, %v120
    %v426 = vmul.f32 %v424, %v121
    %s427 = sld [smem:[#allocation2 + $0x202]]
    %v428 = vmax.f32 %v418, 0.0
    %v429 = vmax.f32 %v421, 0.0
    %v430 = vstv %s427
    %v431 = vmul.f32 %v430, %v428
    %v432 = vmul.f32 %v430, %v429
    %v433 = vadd.f32 %v425, %v431
    %v434 = vadd.f32 %v426, %v432
    %s435 = scalar_lea.vmem [#allocation12], 640
    %v436 = vld [vmem:[%s435] sm:$0xff]
    %v437 = vld [vmem:[%s435 + $0x8] sm:$0xff]
    %v438 = vld [vmem:[%s435 + $0x10] sm:$0xff]
    %v439 = vld [vmem:[%s435 + $0x18] sm:$0xff]
    %v440 = vld [vmem:[%s435 + $0x20] sm:$0xff]
    %v441 = vld [vmem:[%s435 + $0x28] sm:$0xff]
    %v442 = vld [vmem:[%s435 + $0x30] sm:$0xff]
    %v443 = vld [vmem:[%s435 + $0x38] sm:$0xff]
    %v444 = vld [vmem:[%s435 + $0x40] sm:$0xff]
    %v445 = vld [vmem:[%s435 + $0x48] sm:$0xff]
    %v446 = vld [vmem:[%s435 + $0x50] sm:$0xff]
    %v447 = vld [vmem:[%s435 + $0x58] sm:$0xff]
    %v448 = vld [vmem:[%s435 + $0x60] sm:$0xff]
    %v449 = vld [vmem:[%s435 + $0x68] sm:$0xff]
    %v450 = vld [vmem:[%s435 + $0x70] sm:$0xff]
    %v451 = vld [vmem:[%s435 + $0x78] sm:$0xff]
    %s452 = scalar_lea.vmem %s7, 5
    %v453 = vld [vmem:[%s452] sm:$0x1]
    %v455 = vperm.slane %v453, 0
    %457 = vmatpush.msra.mxu0 %v451
    %458 = vmatpush.msra.mxu0 %v450
    %459 = vmatpush.msra.mxu0 %v449
    %460 = vmatpush.msra.mxu0 %v448
    %461 = vmatpush.msra.mxu0 %v447
    %462 = vmatpush.msra.mxu0 %v446
    %463 = vmatpush.msra.mxu0 %v445
    %464 = vmatpush.msra.mxu0 %v444
    %465 = vmatpush.msra.mxu0 %v443
    %466 = vmatpush.msra.mxu0 %v442
    %467 = vmatpush.msra.mxu0 %v441
    %468 = vmatpush.msra.mxu0 %v440
    %469 = vmatpush.msra.mxu0 %v439
    %470 = vmatpush.msra.mxu0 %v438
    %471 = vmatpush.msra.mxu0 %v437
    %472 = vmatpush.msra.mxu0 %v436
    %473 = vmatmul.f32.gmra.mxu0 %v122
    %v474 = vpop.f32.mrf.mxu0
    %v475 = vadd.f32 %v455, %v474
    %476 = vmatmul.f32.gmra.mxu0 %v123
    %v477 = vpop.f32.mrf.mxu0
    %v478 = vadd.f32 %v455, %v477
    %479 = vdwg.mxu0
    %s480 = sld [smem:[#allocation2 + $0x281]]
    %v481 = vstv %s480
    %v482 = vmul.f32 %v481, %v122
    %v483 = vmul.f32 %v481, %v123
    %s484 = sld [smem:[#allocation2 + $0x282]]
    %v485 = vmax.f32 %v475, 0.0
    %v486 = vmax.f32 %v478, 0.0
    %v487 = vstv %s484
    %v488 = vmul.f32 %v487, %v485
    %v489 = vmul.f32 %v487, %v486
    %v490 = vadd.f32 %v482, %v488
    %v491 = vadd.f32 %v483, %v489
    %v492 = vadd.f32 %v433, %v490
    %v493 = vadd.f32 %v434, %v491
    %v494 = vmax.f32 %v433, %v490
    %v495 = vmax.f32 %v434, %v491
    %s496 = scalar_lea.vmem [#allocation12], 768
    %v497 = vld [vmem:[%s496] sm:$0xff]
    %v498 = vld [vmem:[%s496 + $0x8] sm:$0xff]
    %v499 = vld [vmem:[%s496 + $0x10] sm:$0xff]
    %v500 = vld [vmem:[%s496 + $0x18] sm:$0xff]
    %v501 = vld [vmem:[%s496 + $0x20] sm:$0xff]
    %v502 = vld [vmem:[%s496 + $0x28] sm:$0xff]
    %v503 = vld [vmem:[%s496 + $0x30] sm:$0xff]
    %v504 = vld [vmem:[%s496 + $0x38] sm:$0xff]
    %v505 = vld [vmem:[%s496 + $0x40] sm:$0xff]
    %v506 = vld [vmem:[%s496 + $0x48] sm:$0xff]
    %v507 = vld [vmem:[%s496 + $0x50] sm:$0xff]
    %v508 = vld [vmem:[%s496 + $0x58] sm:$0xff]
    %v509 = vld [vmem:[%s496 + $0x60] sm:$0xff]
    %v510 = vld [vmem:[%s496 + $0x68] sm:$0xff]
    %v511 = vld [vmem:[%s496 + $0x70] sm:$0xff]
    %v512 = vld [vmem:[%s496 + $0x78] sm:$0xff]
    %s513 = scalar_lea.vmem %s7, 6
    %v514 = vld [vmem:[%s513] sm:$0x1]
    %v516 = vperm.slane %v514, 0
    %518 = vmatpush.msra.mxu0 %v512
    %519 = vmatpush.msra.mxu0 %v511
    %520 = vmatpush.msra.mxu0 %v510
    %521 = vmatpush.msra.mxu0 %v509
    %522 = vmatpush.msra.mxu0 %v508
    %523 = vmatpush.msra.mxu0 %v507
    %524 = vmatpush.msra.mxu0 %v506
    %525 = vmatpush.msra.mxu0 %v505
    %526 = vmatpush.msra.mxu0 %v504
    %527 = vmatpush.msra.mxu0 %v503
    %528 = vmatpush.msra.mxu0 %v502
    %529 = vmatpush.msra.mxu0 %v501
    %530 = vmatpush.msra.mxu0 %v500
    %531 = vmatpush.msra.mxu0 %v499
    %532 = vmatpush.msra.mxu0 %v498
    %533 = vmatpush.msra.mxu0 %v497
    %534 = vmatmul.f32.gmra.mxu0 %v124
    %v535 = vpop.f32.mrf.mxu0
    %v536 = vadd.f32 %v516, %v535
    %537 = vmatmul.f32.gmra.mxu0 %v125
    %v538 = vpop.f32.mrf.mxu0
    %v539 = vadd.f32 %v516, %v538
    %540 = vdwg.mxu0
    %s541 = sld [smem:[#allocation2 + $0x301]]
    %v542 = vstv %s541
    %v543 = vmul.f32 %v542, %v124
    %v544 = vmul.f32 %v542, %v125
    %s545 = sld [smem:[#allocation2 + $0x302]]
    %v546 = vmax.f32 %v536, 0.0
    %v547 = vmax.f32 %v539, 0.0
    %v548 = vstv %s545
    %v549 = vmul.f32 %v548, %v546
    %v550 = vmul.f32 %v548, %v547
    %v551 = vadd.f32 %v543, %v549
    %v552 = vadd.f32 %v544, %v550
    %v553 = vadd.f32 %v492, %v551
    %v554 = vadd.f32 %v493, %v552
    %v555 = vmax.f32 %v494, %v551
    %v556 = vmax.f32 %v495, %v552
    %s557 = scalar_lea.vmem [#allocation12], 896
    %v558 = vld [vmem:[%s557] sm:$0xff]
    %v559 = vld [vmem:[%s557 + $0x8] sm:$0xff]
    %v560 = vld [vmem:[%s557 + $0x10] sm:$0xff]
    %v561 = vld [vmem:[%s557 + $0x18] sm:$0xff]
    %v562 = vld [vmem:[%s557 + $0x20] sm:$0xff]
    %v563 = vld [vmem:[%s557 + $0x28] sm:$0xff]
    %v564 = vld [vmem:[%s557 + $0x30] sm:$0xff]
    %v565 = vld [vmem:[%s557 + $0x38] sm:$0xff]
    %v566 = vld [vmem:[%s557 + $0x40] sm:$0xff]
    %v567 = vld [vmem:[%s557 + $0x48] sm:$0xff]
    %v568 = vld [vmem:[%s557 + $0x50] sm:$0xff]
    %v569 = vld [vmem:[%s557 + $0x58] sm:$0xff]
    %v570 = vld [vmem:[%s557 + $0x60] sm:$0xff]
    %v571 = vld [vmem:[%s557 + $0x68] sm:$0xff]
    %v572 = vld [vmem:[%s557 + $0x70] sm:$0xff]
    %v573 = vld [vmem:[%s557 + $0x78] sm:$0xff]
    %s574 = scalar_lea.vmem %s7, 7
    %v575 = vld [vmem:[%s574] sm:$0x1]
    %v577 = vperm.slane %v575, 0
    %579 = vmatpush.msra.mxu0 %v573
    %580 = vmatpush.msra.mxu0 %v572
    %581 = vmatpush.msra.mxu0 %v571
    %582 = vmatpush.msra.mxu0 %v570
    %583 = vmatpush.msra.mxu0 %v569
    %584 = vmatpush.msra.mxu0 %v568
    %585 = vmatpush.msra.mxu0 %v567
    %586 = vmatpush.msra.mxu0 %v566
    %587 = vmatpush.msra.mxu0 %v565
    %588 = vmatpush.msra.mxu0 %v564
    %589 = vmatpush.msra.mxu0 %v563
    %590 = vmatpush.msra.mxu0 %v562
    %591 = vmatpush.msra.mxu0 %v561
    %592 = vmatpush.msra.mxu0 %v560
    %593 = vmatpush.msra.mxu0 %v559
    %594 = vmatpush.msra.mxu0 %v558
    %595 = vmatmul.f32.gmra.mxu0 %v126
    %v596 = vpop.f32.mrf.mxu0
    %v597 = vadd.f32 %v577, %v596
    %598 = vmatmul.f32.gmra.mxu0 %v127
    %v599 = vpop.f32.mrf.mxu0
    %v600 = vadd.f32 %v577, %v599
    %601 = vdwg.mxu0
    %s602 = sld [smem:[#allocation2 + $0x381]]
    %v603 = vstv %s602
    %v604 = vmul.f32 %v603, %v126
    %v605 = vmul.f32 %v603, %v127
    %s606 = sld [smem:[#allocation2 + $0x382]]
    %v607 = vmax.f32 %v597, 0.0
    %v608 = vmax.f32 %v600, 0.0
    %v609 = vstv %s606
    %v610 = vmul.f32 %v609, %v607
    %v611 = vmul.f32 %v609, %v608
    %v612 = vadd.f32 %v604, %v610
    %v613 = vadd.f32 %v605, %v611
    %v614 = vadd.f32 %v553, %v612
    %v615 = vadd.f32 %v554, %v613
    %v616 = vmax.f32 %v555, %v612
    %v617 = vmax.f32 %v556, %v613
    %s618 = scalar_lea.vmem [#allocation12], 1024
    %v619 = vld [vmem:[%s618] sm:$0xff]
    %v620 = vld [vmem:[%s618 + $0x8] sm:$0xff]
    %v621 = vld [vmem:[%s618 + $0x10] sm:$0xff]
    %v622 = vld [vmem:[%s618 + $0x18] sm:$0xff]
    %v623 = vld [vmem:[%s618 + $0x20] sm:$0xff]
    %v624 = vld [vmem:[%s618 + $0x28] sm:$0xff]
    %v625 = vld [vmem:[%s618 + $0x30] sm:$0xff]
    %v626 = vld [vmem:[%s618 + $0x38] sm:$0xff]
    %v627 = vld [vmem:[%s618 + $0x40] sm:$0xff]
    %v628 = vld [vmem:[%s618 + $0x48] sm:$0xff]
    %v629 = vld [vmem:[%s618 + $0x50] sm:$0xff]
    %v630 = vld [vmem:[%s618 + $0x58] sm:$0xff]
    %v631 = vld [vmem:[%s618 + $0x60] sm:$0xff]
    %v632 = vld [vmem:[%s618 + $0x68] sm:$0xff]
    %v633 = vld [vmem:[%s618 + $0x70] sm:$0xff]
    %v634 = vld [vmem:[%s618 + $0x78] sm:$0xff]
    %s635 = scalar_lea.vmem %s7, 8
    %v636 = vld [vmem:[%s635] sm:$0x1]
    %v638 = vperm.slane %v636, 0
    %640 = vmatpush.msra.mxu0 %v634
    %641 = vmatpush.msra.mxu0 %v633
    %642 = vmatpush.msra.mxu0 %v632
    %643 = vmatpush.msra.mxu0 %v631
    %644 = vmatpush.msra.mxu0 %v630
    %645 = vmatpush.msra.mxu0 %v629
    %646 = vmatpush.msra.mxu0 %v628
    %647 = vmatpush.msra.mxu0 %v627
    %648 = vmatpush.msra.mxu0 %v626
    %649 = vmatpush.msra.mxu0 %v625
    %650 = vmatpush.msra.mxu0 %v624
    %651 = vmatpush.msra.mxu0 %v623
    %652 = vmatpush.msra.mxu0 %v622
    %653 = vmatpush.msra.mxu0 %v621
    %654 = vmatpush.msra.mxu0 %v620
    %655 = vmatpush.msra.mxu0 %v619
    %656 = vmatmul.f32.gmra.mxu0 %v374
    %v657 = vpop.f32.mrf.mxu0
    %v658 = vadd.f32 %v638, %v657
    %659 = vmatmul.f32.gmra.mxu0 %v375
    %v660 = vpop.f32.mrf.mxu0
    %v661 = vadd.f32 %v638, %v660
    %662 = vdwg.mxu0
    %s663 = sld [smem:[#allocation2 + $0x401]]
    %v664 = vstv %s663
    %v665 = vmul.f32 %v664, %v374
    %v666 = vmul.f32 %v664, %v375
    %s667 = sld [smem:[#allocation2 + $0x402]]
    %v668 = vmax.f32 %v658, 0.0
    %v669 = vmax.f32 %v661, 0.0
    %v670 = vstv %s667
    %v671 = vmul.f32 %v670, %v668
    %v672 = vmul.f32 %v670, %v669
    %v673 = vadd.f32 %v665, %v671
    %v674 = vadd.f32 %v666, %v672
    %v675 = vadd.f32 %v614, %v673
    %v676 = vadd.f32 %v615, %v674
    %v677 = vmax.f32 %v616, %v673
    %v678 = vmax.f32 %v617, %v674
    %s679 = sld [smem:[#allocation7 + $0x80]]
    %v680 = vstv %s679
    %v681 = vmul.f32 %v680, %v675
    %v682 = vmul.f32 %v680, %v676
    %s683 = sld [smem:[#allocation7 + $0x81]]
    %v684 = vstv %s683
    %v685 = vmul.f32 %v684, %v677
    %v686 = vmul.f32 %v684, %v678
    %v687 = vadd.f32 %v681, %v685
    %v688 = vadd.f32 %v682, %v686
    %s689 = scalar_lea.vmem [#allocation14], 16
    %690 = vst [vmem:[%s689] sm:$0xff] %v687
    %691 = vst [vmem:[%s689 + $0x8] sm:$0xff] %v688
    // Predicated region
    $region58: #{tpu_custom_call.1} parent=1 // pred_check
      _
    $region59: #{tpu_custom_call.1} parent=1 // pred_check_branch
      %693 = sbr.rel (0) target = $region61
    $region60: #{tpu_custom_call.1} parent=1 // pred_region
      %695 = vsyncadd [#allocation4], 0
      %s696 = sshll.u32 [#allocation14], 4
      %s697 = int_to_ptr.vmem [resolvable:$true] %s696
      %s698 = sshll.u32 %s8, 4
      %s699 = int_to_ptr.hbm [resolvable:$true] %s698
      %704 = dma.vmem_to_hbm [thread:$0]  %s697, 512, %s699, [#allocation4], 128, 128, 8
    $region61: #{tpu_custom_call.1} parent=1 // pred_fallthru
      _
    // Predicated region
    $region62: #{tpu_custom_call.1} parent=1 // pred_check
      _
    $region63: #{tpu_custom_call.1} parent=1 // pred_check_branch
      %706 = sbr.rel (0) target = $region65
    $region64: #{tpu_custom_call.1} parent=1 // pred_region
      %708 = dma.done [#allocation4], 512
    $region65: #{tpu_custom_call.1} parent=1 // pred_fallthru
      _
    %709 = vsyncpa [#allocation3], 1
    %710 = vsyncpa [#allocation10], 1
    %711 = vsyncpa [#allocation13], 1
    %712 = vsyncpa [#allocation4], 1
    %713 = vsyncpa [#allocation5], 1
    %714 = vsyncpa [#allocation6], 1

</llo_original>
